<compile_context>
chip_gen: v6e
topology: v6e:2x2x1
jax: 0.10.0
libtpu: 0.0.40
codegen_flags: <defaults>
</compile_context>

<pallas_src>
import functools

import numpy as np
import jax
import jax.numpy as jnp
from jax import lax
from jax.experimental import pallas as pl
from jax.experimental.pallas import tpu as pltpu


# ------------------------------ Pallas kernel ------------------------------ #
def _up1_fused_kernel(x1_ref, x2_ref, mask_ref, wup_ref, bup_ref,
                      w1_ref, b1_ref, w2_ref, b2_ref, o_ref,
                      *, w, cup, l1, l2):
    """One batch sample per grid step; activations are (channels, flat_spatial)."""
    # -- Stage 1: ConvTranspose2d(k=2, s=2) + bias + ReLU.
    #    x1_ref holds x1 nearest-repeated 2x onto the crop grid, so ALL four
    #    2x2 taps come out of ONE GEMM; precomputed 0/1 parity masks then pick
    #    the correct tap per lane (replaces the old dense scatter GEMM).
    t = jnp.dot(wup_ref[...], x1_ref[0],
                preferred_element_type=jnp.float32)            # (4*cup, grid_n)
    m = mask_ref[...]                                          # (4, grid_n) 0/1
    y = (t[0 * cup:1 * cup] * m[0:1] + t[1 * cup:2 * cup] * m[1:2]
         + t[2 * cup:3 * cup] * m[2:3] + t[3 * cup:4 * cup] * m[3:4])
    y = jnp.maximum(y + bup_ref[...], 0.0)                     # (cup, grid_n)

    # CentralCrop + channel concat are implicit in the layout: x2_ref is the
    # cropped window flattened onto the same grid.
    cat = jnp.concatenate([y, x2_ref[0]], axis=0)              # (cin, grid_n)

    # -- Stage 2: first 3x3 VALID conv + bias + ReLU as ONE GEMM on an
    #    in-VMEM im2col (9 shifted slices stacked along sublanes).
    a1 = jnp.concatenate(
        [cat[:, di * w + dj:di * w + dj + l1]
         for di in range(3) for dj in range(3)], axis=0)       # (9*cin, l1)
    h = jnp.dot(w1_ref[...], a1, preferred_element_type=jnp.float32)
    h = jnp.maximum(h + b1_ref[...], 0.0)                      # (cmid, l1)

    # -- Stage 3: second 3x3 VALID conv + bias + ReLU, same im2col trick.
    a2 = jnp.concatenate(
        [h[:, di * w + dj:di * w + dj + l2]
         for di in range(3) for dj in range(3)], axis=0)       # (9*cmid, l2)
    out = jnp.dot(w2_ref[...], a2, preferred_element_type=jnp.float32)
    out = jnp.maximum(out + b2_ref[...], 0.0)                  # (cout, l2)

    # Single full-block store (no zero-fill, no masked double store).
    o_ref[0] = out.astype(o_ref.dtype)


# --------------------------- parameter preparation ------------------------- #
def _crop_geometry(h2, w2, central_fraction):
    # Matches CentralCrop's int(float) semantics exactly.
    sh = int((h2 - h2 * central_fraction) / 2)
    sw = int((w2 - w2 * central_fraction) / 2)
    ch = int(h2 * central_fraction)
    cw = int(w2 * central_fraction)
    return sh, sw, ch, cw


def pack_up1_params(params, x1_shape, x2_shape, central_fraction=56.0 / 64.0):
    """One-time host-side repack of weights into kernel-friendly GEMM layouts."""
    _, cin, h1, w1 = x1_shape
    _, c2, h2, w2 = x2_shape
    cup = cin // 2
    _, _, ch, cw = _crop_geometry(h2, w2, central_fraction)
    assert ch == 2 * h1 and cw == 2 * w1, "crop window must match upsampled x1"
    assert c2 == cup, "x2 channels must equal in_channels // 2"

    w_up, b_up = params["up_w"], params["up_b"]      # (cin, cup, 2, 2), (cup,)
    w1p, b1 = params["c1_w"], params["c1_b"]         # (cmid, cin, 3, 3), (cmid,)
    w2p, b2 = params["c2_w"], params["c2_b"]         # (cout, cmid, 3, 3), (cout,)
    cmid, cout = w1p.shape[0], w2p.shape[0]

    # 0/1 parity masks on the flat crop grid: tap kk = (r%2)*2 + (c%2).
    # Tiny (4 * grid) and scales linearly, unlike the old (H1W1 x H2W2) scatter.
    rr = np.arange(ch)[:, None]
    cc = np.arange(cw)[None, :]
    par = ((rr % 2) * 2 + (cc % 2)).reshape(1, ch * cw)
    masks = (par == np.arange(4)[:, None]).astype(np.float32)   # (4, ch*cw)

    return {
        # (4*cup, cin): the four transposed-conv taps stacked -> one GEMM.
        "wup": jnp.transpose(w_up, (2, 3, 1, 0)).reshape(4 * cup, cin),
        "bup": b_up.reshape(cup, 1),
        "mask": jnp.asarray(masks),
        # im2col-packed 3x3 weights: columns ordered (tap k, input channel).
        "w1": jnp.transpose(w1p, (0, 2, 3, 1)).reshape(cmid, 9 * cin),
        "b1": b1.reshape(cmid, 1),
        "w2": jnp.transpose(w2p, (0, 2, 3, 1)).reshape(cout, 9 * cmid),
        "b2": b2.reshape(cout, 1),
    }


# ------------------------------- Up1 forward ------------------------------- #
def up1_forward(packed, x1, x2, central_fraction=56.0 / 64.0):
    n, cin, h1, w1 = x1.shape
    _, c2, h2, w2 = x2.shape
    cup = cin // 2
    cmid = packed["w1"].shape[0]
    cout = packed["w2"].shape[0]
    sh, sw, ch, cw = _crop_geometry(h2, w2, central_fraction)
    assert ch == 2 * h1 and cw == 2 * w1, "crop window must match upsampled x1"

    grid_n = ch * cw
    l1 = grid_n - 2 * cw - 2                  # conv1 flat output extent
    l2 = l1 - 2 * cw - 2                      # conv2 flat output extent
    ho, wo = ch - 4, cw - 4                   # valid window after two VALID 3x3s
    # Flat-layout safety (review concern): valid window must stay inside the
    # stored l2 lanes and never touch a row-wrap column.
    assert cw > 4 and (ho - 1) * cw + (wo - 1) < l2

    # Host-side layout plumbing only: crop x2, 2x nearest-repeat x1 onto the
    # same flat crop grid (this replaces the in-kernel scatter GEMM), and
    # flatten spatial onto the lane axis (still NCHW order -- no transposes).
    x1r = jnp.repeat(jnp.repeat(x1, 2, axis=2), 2, axis=3).reshape(n, cin, grid_n)
    x2c = x2[:, :, sh:sh + ch, sw:sw + cw].reshape(n, c2, grid_n)

    kernel = functools.partial(_up1_fused_kernel, w=cw, cup=cup, l1=l1, l2=l2)
    out_flat = pl.pallas_call(
        kernel,
        out_shape=jax.ShapeDtypeStruct((n, cout, l2), jnp.float32),
        grid=(n,),
        in_specs=[
            pl.BlockSpec((1, cin, grid_n), lambda b: (b, 0, 0)),
            pl.BlockSpec((1, c2, grid_n), lambda b: (b, 0, 0)),
            pl.BlockSpec((4, grid_n), lambda b: (0, 0)),
            pl.BlockSpec((4 * cup, cin), lambda b: (0, 0)),
            pl.BlockSpec((cup, 1), lambda b: (0, 0)),
            pl.BlockSpec((cmid, 9 * cin), lambda b: (0, 0)),
            pl.BlockSpec((cmid, 1), lambda b: (0, 0)),
            pl.BlockSpec((cout, 9 * cmid), lambda b: (0, 0)),
            pl.BlockSpec((cout, 1), lambda b: (0, 0)),
        ],
        out_specs=pl.BlockSpec((1, cout, l2), lambda b: (b, 0, 0)),
        compiler_params=pltpu.CompilerParams(
            dimension_semantics=("parallel",),   # batch across v7x's two TCs
        ),
    )(x1r, x2c, packed["mask"], packed["wup"], packed["bup"],
      packed["w1"], packed["b1"], packed["w2"], packed["b2"])

    # Host-side extraction of the valid (ho, wo) window from the flat layout.
    pad = (-l2) % cw
    out_rows = jnp.pad(out_flat, ((0, 0), (0, 0), (0, pad))).reshape(
        n, cout, -1, cw)
    return out_rows[:, :, :ho, :wo]


# ---------------------------- reference utilities -------------------------- #
def central_crop_ref(image, central_fraction):
    _, _, h, w = image.shape
    if central_fraction == 1.0:
        return image
    sh = int((h - h * central_fraction) / 2)
    eh = sh + int(h * central_fraction)
    sw = int((w - w * central_fraction) / 2)
    ew = sw + int(w * central_fraction)
    return image[:, :, sh:eh, sw:ew]


def init_params(key, in_channels, out_channels):
    mid = out_channels
    ks = jax.random.split(key, 6)

    def u(k, shape, fan_in):
        bound = 1.0 / float(fan_in) ** 0.5
        return jax.random.uniform(k, shape, jnp.float32, -bound, bound)

    cup = in_channels // 2
    return {
        "up_w": u(ks[0], (in_channels, cup, 2, 2), in_channels * 4),
        "up_b": u(ks[1], (cup,), in_channels * 4),
        "c1_w": u(ks[2], (mid, in_channels, 3, 3), in_channels * 9),
        "c1_b": u(ks[3], (mid,), in_channels * 9),
        "c2_w": u(ks[4], (out_channels, mid, 3, 3), mid * 9),
        "c2_b": u(ks[5], (out_channels,), mid * 9),
    }


if __name__ == "__main__":
    key = jax.random.PRNGKey(0)
    k1, k2, kp = jax.random.split(key, 3)
    in_channels, out_channels = 8, 4
    # x1 spatial 7 -> upsampled 14; x2 spatial 16 -> crop 16*56/64 = 14 (aligned)
    x1 = jax.random.normal(k1, (2, in_channels, 7, 7), jnp.float32)
    x2 = jax.random.normal(k2, (2, in_channels // 2, 16, 16), jnp.float32)
    params = init_params(kp, in_channels, out_channels)

    packed = pack_up1_params(params, x1.shape, x2.shape)
    fwd = jax.jit(up1_forward)
    out = jax.block_until_ready(fwd(packed, x1, x2))
    assert out.shape == (2, out_channels, 10, 10), out.shape

    # pure-JAX reference (XLA convs) to validate the fused Pallas path
    cup = in_channels // 2
    ref_up = jnp.einsum("ncij,cokl->noikjl", x1, params["up_w"]).reshape(
        2, cup, 14, 14) + params["up_b"][None, :, None, None]
    ref1 = jnp.maximum(ref_up, 0.0)
    ref2 = central_crop_ref(x2, 56.0 / 64.0)
    refx = jnp.concatenate([ref1, ref2], axis=1)
    dn = ("NCHW", "OIHW", "NCHW")
    rh = lax.conv_general_dilated(refx, params["c1_w"], (1, 1), "VALID",
                                  dimension_numbers=dn)
    rh = jnp.maximum(rh + params["c1_b"][None, :, None, None], 0.0)
    ro = lax.conv_general_dilated(rh, params["c2_w"], (1, 1), "VALID",
                                  dimension_numbers=dn)
    ro = jnp.maximum(ro + params["c2_b"][None, :, None, None], 0.0)
    assert jnp.allclose(out, ro, atol=2e-4, rtol=2e-4), float(
        jnp.max(jnp.abs(out - ro)))

    print("KERNEL_OK")
</pallas_src>

<mosaic_0001>
module attributes {stable_mosaic.version = 11 : i64} {
  func.func @_up1_fused_kernel(%arg0: i32, %arg1: memref<1x8x196xf32, #tpu.memory_space<vmem>>, %arg2: memref<1x4x196xf32, #tpu.memory_space<vmem>>, %arg3: memref<4x196xf32, #tpu.memory_space<vmem>>, %arg4: memref<16x8xf32, #tpu.memory_space<vmem>>, %arg5: memref<4x1xf32, #tpu.memory_space<vmem>>, %arg6: memref<4x72xf32, #tpu.memory_space<vmem>>, %arg7: memref<4x1xf32, #tpu.memory_space<vmem>>, %arg8: memref<4x36xf32, #tpu.memory_space<vmem>>, %arg9: memref<4x1xf32, #tpu.memory_space<vmem>>, %arg10: memref<1x4x136xf32, #tpu.memory_space<vmem>>) attributes {dimension_semantics = [#tpu.dimension_semantics<parallel>], iteration_bounds = array<i64: 2>, scalar_prefetch = 0 : i64, scratch_operands = 0 : i64, tpu.core_type = #tpu.core_type<tc>, window_params = [{transform_indices = @transform_0, window_bounds = array<i64: 1, 8, 196>}, {transform_indices = @transform_1, window_bounds = array<i64: 1, 4, 196>}, {pipeline_mode = #tpu.pipeline_mode<synchronous>, transform_indices = @transform_2, window_bounds = array<i64: 4, 196>}, {pipeline_mode = #tpu.pipeline_mode<synchronous>, transform_indices = @transform_3, window_bounds = array<i64: 16, 8>}, {pipeline_mode = #tpu.pipeline_mode<synchronous>, transform_indices = @transform_4, window_bounds = array<i64: 4, 1>}, {pipeline_mode = #tpu.pipeline_mode<synchronous>, transform_indices = @transform_5, window_bounds = array<i64: 4, 72>}, {pipeline_mode = #tpu.pipeline_mode<synchronous>, transform_indices = @transform_6, window_bounds = array<i64: 4, 1>}, {pipeline_mode = #tpu.pipeline_mode<synchronous>, transform_indices = @transform_7, window_bounds = array<i64: 4, 36>}, {pipeline_mode = #tpu.pipeline_mode<synchronous>, transform_indices = @transform_8, window_bounds = array<i64: 4, 1>}, {transform_indices = @transform_9, window_bounds = array<i64: 1, 4, 136>}]} {
    %c0 = arith.constant 0 : index
    %c0_0 = arith.constant 0 : index
    %0 = vector.load %arg4[%c0, %c0_0] : memref<16x8xf32, #tpu.memory_space<vmem>>, vector<16x8xf32>
    %c0_1 = arith.constant 0 : index
    %c0_2 = arith.constant 0 : index
    %c0_3 = arith.constant 0 : index
    %1 = vector.load %arg1[%c0_1, %c0_2, %c0_3] : memref<1x8x196xf32, #tpu.memory_space<vmem>>, vector<1x8x196xf32>
    %2 = vector.shape_cast %1 : vector<1x8x196xf32> to vector<8x196xf32>
    %cst = arith.constant dense<0.000000e+00> : vector<16x196xf32>
    %3 = tpu.matmul %0, %2, %cst {dimension_numbers = #tpu.dot_dimension_numbers<[1], [0], [0], [1], [0, 0, 1, 1], [], []>} : vector<16x8xf32>, vector<8x196xf32>, vector<16x196xf32> -> vector<16x196xf32>
    %c0_4 = arith.constant 0 : index
    %c0_5 = arith.constant 0 : index
    %4 = vector.load %arg3[%c0_4, %c0_5] : memref<4x196xf32, #tpu.memory_space<vmem>>, vector<4x196xf32>
    %5 = vector.extract_strided_slice %3 {offsets = [0, 0], sizes = [4, 196], strides = [1, 1]} : vector<16x196xf32> to vector<4x196xf32>
    %6 = vector.extract_strided_slice %4 {offsets = [0, 0], sizes = [1, 196], strides = [1, 1]} : vector<4x196xf32> to vector<1x196xf32>
    %7 = vector.broadcast %6 : vector<1x196xf32> to vector<4x196xf32>
    %8 = arith.mulf %5, %7 : vector<4x196xf32>
    %9 = vector.extract_strided_slice %3 {offsets = [4, 0], sizes = [4, 196], strides = [1, 1]} : vector<16x196xf32> to vector<4x196xf32>
    %10 = vector.extract_strided_slice %4 {offsets = [1, 0], sizes = [1, 196], strides = [1, 1]} : vector<4x196xf32> to vector<1x196xf32>
    %11 = vector.broadcast %10 : vector<1x196xf32> to vector<4x196xf32>
    %12 = arith.mulf %9, %11 : vector<4x196xf32>
    %13 = arith.addf %8, %12 : vector<4x196xf32>
    %14 = vector.extract_strided_slice %3 {offsets = [8, 0], sizes = [4, 196], strides = [1, 1]} : vector<16x196xf32> to vector<4x196xf32>
    %15 = vector.extract_strided_slice %4 {offsets = [2, 0], sizes = [1, 196], strides = [1, 1]} : vector<4x196xf32> to vector<1x196xf32>
    %16 = vector.broadcast %15 : vector<1x196xf32> to vector<4x196xf32>
    %17 = arith.mulf %14, %16 : vector<4x196xf32>
    %18 = arith.addf %13, %17 : vector<4x196xf32>
    %19 = vector.extract_strided_slice %3 {offsets = [12, 0], sizes = [4, 196], strides = [1, 1]} : vector<16x196xf32> to vector<4x196xf32>
    %20 = vector.extract_strided_slice %4 {offsets = [3, 0], sizes = [1, 196], strides = [1, 1]} : vector<4x196xf32> to vector<1x196xf32>
    %21 = vector.broadcast %20 : vector<1x196xf32> to vector<4x196xf32>
    %22 = arith.mulf %19, %21 : vector<4x196xf32>
    %23 = arith.addf %18, %22 : vector<4x196xf32>
    %c0_6 = arith.constant 0 : index
    %c0_7 = arith.constant 0 : index
    %24 = vector.load %arg5[%c0_6, %c0_7] : memref<4x1xf32, #tpu.memory_space<vmem>>, vector<4x1xf32>
    %25 = vector.broadcast %24 : vector<4x1xf32> to vector<4x196xf32>
    %26 = arith.addf %23, %25 : vector<4x196xf32>
    %cst_8 = arith.constant 0.000000e+00 : f32
    %27 = vector.broadcast %cst_8 : f32 to vector<4x196xf32>
    %28 = arith.maximumf %26, %27 : vector<4x196xf32>
    %c0_9 = arith.constant 0 : index
    %c0_10 = arith.constant 0 : index
    %c0_11 = arith.constant 0 : index
    %29 = vector.load %arg2[%c0_9, %c0_10, %c0_11] : memref<1x4x196xf32, #tpu.memory_space<vmem>>, vector<1x4x196xf32>
    %30 = vector.shape_cast %29 : vector<1x4x196xf32> to vector<4x196xf32>
    %31 = tpu.concatenate %28, %30 in 0 : vector<4x196xf32>, vector<4x196xf32> -> vector<8x196xf32>
    %32 = vector.extract_strided_slice %31 {offsets = [0, 0], sizes = [8, 166], strides = [1, 1]} : vector<8x196xf32> to vector<8x166xf32>
    %33 = vector.extract_strided_slice %31 {offsets = [0, 1], sizes = [8, 166], strides = [1, 1]} : vector<8x196xf32> to vector<8x166xf32>
    %34 = vector.extract_strided_slice %31 {offsets = [0, 2], sizes = [8, 166], strides = [1, 1]} : vector<8x196xf32> to vector<8x166xf32>
    %35 = vector.extract_strided_slice %31 {offsets = [0, 14], sizes = [8, 166], strides = [1, 1]} : vector<8x196xf32> to vector<8x166xf32>
    %36 = vector.extract_strided_slice %31 {offsets = [0, 15], sizes = [8, 166], strides = [1, 1]} : vector<8x196xf32> to vector<8x166xf32>
    %37 = vector.extract_strided_slice %31 {offsets = [0, 16], sizes = [8, 166], strides = [1, 1]} : vector<8x196xf32> to vector<8x166xf32>
    %38 = vector.extract_strided_slice %31 {offsets = [0, 28], sizes = [8, 166], strides = [1, 1]} : vector<8x196xf32> to vector<8x166xf32>
    %39 = vector.extract_strided_slice %31 {offsets = [0, 29], sizes = [8, 166], strides = [1, 1]} : vector<8x196xf32> to vector<8x166xf32>
    %40 = vector.extract_strided_slice %31 {offsets = [0, 30], sizes = [8, 166], strides = [1, 1]} : vector<8x196xf32> to vector<8x166xf32>
    %41 = tpu.concatenate %32, %33, %34, %35, %36, %37, %38, %39, %40 in 0 : vector<8x166xf32>, vector<8x166xf32>, vector<8x166xf32>, vector<8x166xf32>, vector<8x166xf32>, vector<8x166xf32>, vector<8x166xf32>, vector<8x166xf32>, vector<8x166xf32> -> vector<72x166xf32>
    %c0_12 = arith.constant 0 : index
    %c0_13 = arith.constant 0 : index
    %42 = vector.load %arg6[%c0_12, %c0_13] : memref<4x72xf32, #tpu.memory_space<vmem>>, vector<4x72xf32>
    %cst_14 = arith.constant dense<0.000000e+00> : vector<4x166xf32>
    %43 = tpu.matmul %42, %41, %cst_14 {dimension_numbers = #tpu.dot_dimension_numbers<[1], [0], [0], [1], [0, 0, 1, 1], [], []>} : vector<4x72xf32>, vector<72x166xf32>, vector<4x166xf32> -> vector<4x166xf32>
    %c0_15 = arith.constant 0 : index
    %c0_16 = arith.constant 0 : index
    %44 = vector.load %arg7[%c0_15, %c0_16] : memref<4x1xf32, #tpu.memory_space<vmem>>, vector<4x1xf32>
    %45 = vector.broadcast %44 : vector<4x1xf32> to vector<4x166xf32>
    %46 = arith.addf %43, %45 : vector<4x166xf32>
    %cst_17 = arith.constant 0.000000e+00 : f32
    %47 = vector.broadcast %cst_17 : f32 to vector<4x166xf32>
    %48 = arith.maximumf %46, %47 : vector<4x166xf32>
    %49 = vector.extract_strided_slice %48 {offsets = [0, 0], sizes = [4, 136], strides = [1, 1]} : vector<4x166xf32> to vector<4x136xf32>
    %50 = vector.extract_strided_slice %48 {offsets = [0, 1], sizes = [4, 136], strides = [1, 1]} : vector<4x166xf32> to vector<4x136xf32>
    %51 = vector.extract_strided_slice %48 {offsets = [0, 2], sizes = [4, 136], strides = [1, 1]} : vector<4x166xf32> to vector<4x136xf32>
    %52 = vector.extract_strided_slice %48 {offsets = [0, 14], sizes = [4, 136], strides = [1, 1]} : vector<4x166xf32> to vector<4x136xf32>
    %53 = vector.extract_strided_slice %48 {offsets = [0, 15], sizes = [4, 136], strides = [1, 1]} : vector<4x166xf32> to vector<4x136xf32>
    %54 = vector.extract_strided_slice %48 {offsets = [0, 16], sizes = [4, 136], strides = [1, 1]} : vector<4x166xf32> to vector<4x136xf32>
    %55 = vector.extract_strided_slice %48 {offsets = [0, 28], sizes = [4, 136], strides = [1, 1]} : vector<4x166xf32> to vector<4x136xf32>
    %56 = vector.extract_strided_slice %48 {offsets = [0, 29], sizes = [4, 136], strides = [1, 1]} : vector<4x166xf32> to vector<4x136xf32>
    %57 = vector.extract_strided_slice %48 {offsets = [0, 30], sizes = [4, 136], strides = [1, 1]} : vector<4x166xf32> to vector<4x136xf32>
    %58 = tpu.concatenate %49, %50, %51, %52, %53, %54, %55, %56, %57 in 0 : vector<4x136xf32>, vector<4x136xf32>, vector<4x136xf32>, vector<4x136xf32>, vector<4x136xf32>, vector<4x136xf32>, vector<4x136xf32>, vector<4x136xf32>, vector<4x136xf32> -> vector<36x136xf32>
    %c0_18 = arith.constant 0 : index
    %c0_19 = arith.constant 0 : index
    %59 = vector.load %arg8[%c0_18, %c0_19] : memref<4x36xf32, #tpu.memory_space<vmem>>, vector<4x36xf32>
    %cst_20 = arith.constant dense<0.000000e+00> : vector<4x136xf32>
    %60 = tpu.matmul %59, %58, %cst_20 {dimension_numbers = #tpu.dot_dimension_numbers<[1], [0], [0], [1], [0, 0, 1, 1], [], []>} : vector<4x36xf32>, vector<36x136xf32>, vector<4x136xf32> -> vector<4x136xf32>
    %c0_21 = arith.constant 0 : index
    %c0_22 = arith.constant 0 : index
    %61 = vector.load %arg9[%c0_21, %c0_22] : memref<4x1xf32, #tpu.memory_space<vmem>>, vector<4x1xf32>
    %62 = vector.broadcast %61 : vector<4x1xf32> to vector<4x136xf32>
    %63 = arith.addf %60, %62 : vector<4x136xf32>
    %cst_23 = arith.constant 0.000000e+00 : f32
    %64 = vector.broadcast %cst_23 : f32 to vector<4x136xf32>
    %65 = arith.maximumf %63, %64 : vector<4x136xf32>
    %c0_24 = arith.constant 0 : index
    %c0_25 = arith.constant 0 : index
    %c0_26 = arith.constant 0 : index
    %66 = vector.load %arg10[%c0_24, %c0_25, %c0_26] : memref<1x4x136xf32, #tpu.memory_space<vmem>>, vector<1x4x136xf32>
    %67 = vector.shape_cast %66 : vector<1x4x136xf32> to vector<4x136xf32>
    %68 = vector.shape_cast %65 : vector<4x136xf32> to vector<1x4x136xf32>
    tpu.vector_store %arg10[%c0_24, %c0_25, %c0_26], %68 {strides = array<i32>} : memref<1x4x136xf32, #tpu.memory_space<vmem>>, vector<1x4x136xf32>,
    return
  }
  func.func @transform_0(%arg0: i32) -> (i32, i32, i32) {
    %c0_i32 = arith.constant 0 : i32
    %c0_i32_0 = arith.constant 0 : i32
    %c0_i32_1 = arith.constant 0 : i32
    return %arg0, %c0_i32, %c0_i32_0 : i32, i32, i32
  }
  func.func @transform_1(%arg0: i32) -> (i32, i32, i32) {
    %c0_i32 = arith.constant 0 : i32
    %c0_i32_0 = arith.constant 0 : i32
    %c0_i32_1 = arith.constant 0 : i32
    return %arg0, %c0_i32, %c0_i32_0 : i32, i32, i32
  }
  func.func @transform_2(%arg0: i32) -> (i32, i32) {
    %c0_i32 = arith.constant 0 : i32
    %c0_i32_0 = arith.constant 0 : i32
    %c0_i32_1 = arith.constant 0 : i32
    return %c0_i32, %c0_i32_0 : i32, i32
  }
  func.func @transform_3(%arg0: i32) -> (i32, i32) {
    %c0_i32 = arith.constant 0 : i32
    %c0_i32_0 = arith.constant 0 : i32
    %c0_i32_1 = arith.constant 0 : i32
    return %c0_i32, %c0_i32_0 : i32, i32
  }
  func.func @transform_4(%arg0: i32) -> (i32, i32) {
    %c0_i32 = arith.constant 0 : i32
    %c0_i32_0 = arith.constant 0 : i32
    %c0_i32_1 = arith.constant 0 : i32
    return %c0_i32, %c0_i32_0 : i32, i32
  }
  func.func @transform_5(%arg0: i32) -> (i32, i32) {
    %c0_i32 = arith.constant 0 : i32
    %c0_i32_0 = arith.constant 0 : i32
    %c0_i32_1 = arith.constant 0 : i32
    return %c0_i32, %c0_i32_0 : i32, i32
  }
  func.func @transform_6(%arg0: i32) -> (i32, i32) {
    %c0_i32 = arith.constant 0 : i32
    %c0_i32_0 = arith.constant 0 : i32
    %c0_i32_1 = arith.constant 0 : i32
    return %c0_i32, %c0_i32_0 : i32, i32
  }
  func.func @transform_7(%arg0: i32) -> (i32, i32) {
    %c0_i32 = arith.constant 0 : i32
    %c0_i32_0 = arith.constant 0 : i32
    %c0_i32_1 = arith.constant 0 : i32
    return %c0_i32, %c0_i32_0 : i32, i32
  }
  func.func @transform_8(%arg0: i32) -> (i32, i32) {
    %c0_i32 = arith.constant 0 : i32
    %c0_i32_0 = arith.constant 0 : i32
    %c0_i32_1 = arith.constant 0 : i32
    return %c0_i32, %c0_i32_0 : i32, i32
  }
  func.func @transform_9(%arg0: i32) -> (i32, i32, i32) {
    %c0_i32 = arith.constant 0 : i32
    %c0_i32_0 = arith.constant 0 : i32
    %c0_i32_1 = arith.constant 0 : i32
    return %arg0, %c0_i32, %c0_i32_0 : i32, i32, i32
  }
}

</mosaic_0001>

<llo_original>
// kernel: up1_forward.1
$region0: #{up1_forward.1}
  #allocation0 [shape = 'u32[]', space=smem, size = 0x4, offset = 0x4, fixed_abs, tag = 'smem constant byte address 0x4 - core index']
  #allocation1 [shape = 'u32[144,128]{1,0:T(1,128)}', space=vmem, size = 0x12000, scoped, tag = 'internal scratch']
  %s0 = inlined_call_operand.vmem [shape: f32[2,8,196], index: 0, kind: input, shape index: {}]
  %s1 = inlined_call_operand.vmem [shape: f32[2,4,196], index: 1, kind: input, shape index: {}]
  %s2 = inlined_call_operand.vmem [shape: f32[4,196], index: 2, kind: input, shape index: {}]
  %s3 = inlined_call_operand.vmem [shape: f32[16,8], index: 3, kind: input, shape index: {}]
  %s4 = inlined_call_operand.vmem [shape: f32[4,1], index: 4, kind: input, shape index: {}]
  %s5 = inlined_call_operand.vmem [shape: f32[4,72], index: 5, kind: input, shape index: {}]
  %s6 = inlined_call_operand.vmem [shape: f32[4,1], index: 6, kind: input, shape index: {}]
  %s7 = inlined_call_operand.vmem [shape: f32[4,36], index: 7, kind: input, shape index: {}]
  %s8 = inlined_call_operand.vmem [shape: f32[4,1], index: 8, kind: input, shape index: {}]
  %s9 = inlined_call_operand.vmem [shape: f32[2,4,136], index: 9, kind: output, shape index: {}]
  %s10 = sld [smem:[#allocation0]]
  $region69: #{up1_forward.1} parent=0
    _
  %s12 = ssub.s32 1, %s10
  %s13 = scalar_select 0, %s12, %s10
  loop: start=0, step=1, limit=4
  $region2: #{up1_forward.1} parent=0 // loop_pre_header
    _
  $region3: #{up1_forward.1} parent=0 // loop_header
    %s15 = sphi 0, %s19
    %p16 = scmp.ge.s32.totalorder %s15, 4
    %s25 = sphi 0, %s27
    %s28 = sphi 0, %s25
    %s29 = sphi 0, %s28
    %s45 = sphi 0, %s29
    %s51 = sphi 0, %s53
    %s54 = sphi 0, %s51
    %s55 = sphi 0, %s54
    %s71 = sphi 0, %s55
    %s75 = sphi 0, %s75
    %s77 = sphi 0, %s75
    %s78 = sphi 0, %s77
    %s92 = sphi 0, %s78
    %s96 = sphi 0, %s96
    %s98 = sphi 0, %s96
    %s99 = sphi 0, %s98
    %s113 = sphi 0, %s99
    %s117 = sphi 0, %s117
    %s119 = sphi 0, %s117
    %s120 = sphi 0, %s119
    %s134 = sphi 0, %s120
    %s138 = sphi 0, %s138
    %s140 = sphi 0, %s138
    %s141 = sphi 0, %s140
    %s155 = sphi 0, %s141
    %s159 = sphi 0, %s159
    %s161 = sphi 0, %s159
    %s162 = sphi 0, %s161
    %s176 = sphi 0, %s162
    %s180 = sphi 0, %s180
    %s182 = sphi 0, %s180
    %s183 = sphi 0, %s182
    %s197 = sphi 0, %s183
    %s201 = sphi 0, %s201
    %s203 = sphi 0, %s201
    %s204 = sphi 0, %s203
    %s218 = sphi 0, %s204
    %s224 = sphi 0, %s226
    %s227 = sphi 0, %s224
    %s228 = sphi 0, %s227
    %s244 = sphi 0, %s228
  $region4: #{up1_forward.1} parent=0 // loop_header_branch
    %18 = sbr.rel (%p16) target = $region8
  $region5: #{up1_forward.1} parent=0 // loop_body
    %s20 = ssub.s32 %s15, 1
    %s21 = ssub.s32 %s15, 2
    %s22 = sadd.s32 %s15, 1
    %s23 = ssub.s32 %s15, %s22
    %p24 = scmp.eq.s32.totalorder %s23, 0
    %s26 = sadd.s32 %s25, 1
    %s27 = scalar_select %p24, %s25, %s26
    %p30 = pneg %p24
    %p31 = scmp.eq.s32.totalorder %s15, 1
    %p32 = por %p30, %p31
    %p33 = scmp.ne.s32.totalorder %s25, %s28
    %p34 = scmp.eq.s32.totalorder %s15, 0
    %p35 = por %p33, %p34
    %p36 = scmp.ne.s32.totalorder %s25, %s28
    %p37 = scmp.eq.s32.totalorder %s20, 1
    %p38 = por %p36, %p37
    %p39 = scmp.ne.s32.totalorder %s28, %s29
    %p40 = scmp.eq.s32.totalorder %s20, 0
    %p41 = por %p39, %p40
    %p42 = scmp.ne.s32.totalorder %s28, %s29
    %p43 = scmp.eq.s32.totalorder %s21, 1
    %p44 = por %p42, %p43
    %p46 = scmp.ne.s32.totalorder %s29, %s45
    %p47 = scmp.eq.s32.totalorder %s21, 0
    %p48 = por %p46, %p47
    %s49 = ssub.s32 %s15, %s22
    %p50 = scmp.eq.s32.totalorder %s49, 0
    %s52 = sadd.s32 %s51, 1
    %s53 = scalar_select %p50, %s51, %s52
    %p56 = pneg %p50
    %p57 = scmp.eq.s32.totalorder %s15, 1
    %p58 = por %p56, %p57
    %p59 = scmp.ne.s32.totalorder %s51, %s54
    %p60 = scmp.eq.s32.totalorder %s15, 0
    %p61 = por %p59, %p60
    %p62 = scmp.ne.s32.totalorder %s51, %s54
    %p63 = scmp.eq.s32.totalorder %s20, 1
    %p64 = por %p62, %p63
    %p65 = scmp.ne.s32.totalorder %s54, %s55
    %p66 = scmp.eq.s32.totalorder %s20, 0
    %p67 = por %p65, %p66
    %p68 = scmp.ne.s32.totalorder %s54, %s55
    %p69 = scmp.eq.s32.totalorder %s21, 1
    %p70 = por %p68, %p69
    %p72 = scmp.ne.s32.totalorder %s55, %s71
    %p73 = scmp.eq.s32.totalorder %s21, 0
    %p74 = por %p72, %p73
    %s76 = sadd.s32 %s75, 1
    %p79 = scmp.eq.s32.totalorder %s15, 1
    %p80 = scmp.ne.s32.totalorder %s75, %s77
    %p81 = scmp.eq.s32.totalorder %s15, 0
    %p82 = por %p80, %p81
    %p83 = scmp.ne.s32.totalorder %s75, %s77
    %p84 = scmp.eq.s32.totalorder %s20, 1
    %p85 = por %p83, %p84
    %p86 = scmp.ne.s32.totalorder %s77, %s78
    %p87 = scmp.eq.s32.totalorder %s20, 0
    %p88 = por %p86, %p87
    %p89 = scmp.ne.s32.totalorder %s77, %s78
    %p90 = scmp.eq.s32.totalorder %s21, 1
    %p91 = por %p89, %p90
    %p93 = scmp.ne.s32.totalorder %s78, %s92
    %p94 = scmp.eq.s32.totalorder %s21, 0
    %p95 = por %p93, %p94
    %s97 = sadd.s32 %s96, 1
    %p100 = scmp.eq.s32.totalorder %s15, 1
    %p101 = scmp.ne.s32.totalorder %s96, %s98
    %p102 = scmp.eq.s32.totalorder %s15, 0
    %p103 = por %p101, %p102
    %p104 = scmp.ne.s32.totalorder %s96, %s98
    %p105 = scmp.eq.s32.totalorder %s20, 1
    %p106 = por %p104, %p105
    %p107 = scmp.ne.s32.totalorder %s98, %s99
    %p108 = scmp.eq.s32.totalorder %s20, 0
    %p109 = por %p107, %p108
    %p110 = scmp.ne.s32.totalorder %s98, %s99
    %p111 = scmp.eq.s32.totalorder %s21, 1
    %p112 = por %p110, %p111
    %p114 = scmp.ne.s32.totalorder %s99, %s113
    %p115 = scmp.eq.s32.totalorder %s21, 0
    %p116 = por %p114, %p115
    %s118 = sadd.s32 %s117, 1
    %p121 = scmp.eq.s32.totalorder %s15, 1
    %p122 = scmp.ne.s32.totalorder %s117, %s119
    %p123 = scmp.eq.s32.totalorder %s15, 0
    %p124 = por %p122, %p123
    %p125 = scmp.ne.s32.totalorder %s117, %s119
    %p126 = scmp.eq.s32.totalorder %s20, 1
    %p127 = por %p125, %p126
    %p128 = scmp.ne.s32.totalorder %s119, %s120
    %p129 = scmp.eq.s32.totalorder %s20, 0
    %p130 = por %p128, %p129
    %p131 = scmp.ne.s32.totalorder %s119, %s120
    %p132 = scmp.eq.s32.totalorder %s21, 1
    %p133 = por %p131, %p132
    %p135 = scmp.ne.s32.totalorder %s120, %s134
    %p136 = scmp.eq.s32.totalorder %s21, 0
    %p137 = por %p135, %p136
    %s139 = sadd.s32 %s138, 1
    %p142 = scmp.eq.s32.totalorder %s15, 1
    %p143 = scmp.ne.s32.totalorder %s138, %s140
    %p144 = scmp.eq.s32.totalorder %s15, 0
    %p145 = por %p143, %p144
    %p146 = scmp.ne.s32.totalorder %s138, %s140
    %p147 = scmp.eq.s32.totalorder %s20, 1
    %p148 = por %p146, %p147
    %p149 = scmp.ne.s32.totalorder %s140, %s141
    %p150 = scmp.eq.s32.totalorder %s20, 0
    %p151 = por %p149, %p150
    %p152 = scmp.ne.s32.totalorder %s140, %s141
    %p153 = scmp.eq.s32.totalorder %s21, 1
    %p154 = por %p152, %p153
    %p156 = scmp.ne.s32.totalorder %s141, %s155
    %p157 = scmp.eq.s32.totalorder %s21, 0
    %p158 = por %p156, %p157
    %s160 = sadd.s32 %s159, 1
    %p163 = scmp.eq.s32.totalorder %s15, 1
    %p164 = scmp.ne.s32.totalorder %s159, %s161
    %p165 = scmp.eq.s32.totalorder %s15, 0
    %p166 = por %p164, %p165
    %p167 = scmp.ne.s32.totalorder %s159, %s161
    %p168 = scmp.eq.s32.totalorder %s20, 1
    %p169 = por %p167, %p168
    %p170 = scmp.ne.s32.totalorder %s161, %s162
    %p171 = scmp.eq.s32.totalorder %s20, 0
    %p172 = por %p170, %p171
    %p173 = scmp.ne.s32.totalorder %s161, %s162
    %p174 = scmp.eq.s32.totalorder %s21, 1
    %p175 = por %p173, %p174
    %p177 = scmp.ne.s32.totalorder %s162, %s176
    %p178 = scmp.eq.s32.totalorder %s21, 0
    %p179 = por %p177, %p178
    %s181 = sadd.s32 %s180, 1
    %p184 = scmp.eq.s32.totalorder %s15, 1
    %p185 = scmp.ne.s32.totalorder %s180, %s182
    %p186 = scmp.eq.s32.totalorder %s15, 0
    %p187 = por %p185, %p186
    %p188 = scmp.ne.s32.totalorder %s180, %s182
    %p189 = scmp.eq.s32.totalorder %s20, 1
    %p190 = por %p188, %p189
    %p191 = scmp.ne.s32.totalorder %s182, %s183
    %p192 = scmp.eq.s32.totalorder %s20, 0
    %p193 = por %p191, %p192
    %p194 = scmp.ne.s32.totalorder %s182, %s183
    %p195 = scmp.eq.s32.totalorder %s21, 1
    %p196 = por %p194, %p195
    %p198 = scmp.ne.s32.totalorder %s183, %s197
    %p199 = scmp.eq.s32.totalorder %s21, 0
    %p200 = por %p198, %p199
    %s202 = sadd.s32 %s201, 1
    %p205 = scmp.eq.s32.totalorder %s15, 1
    %p206 = scmp.ne.s32.totalorder %s201, %s203
    %p207 = scmp.eq.s32.totalorder %s15, 0
    %p208 = por %p206, %p207
    %p209 = scmp.ne.s32.totalorder %s201, %s203
    %p210 = scmp.eq.s32.totalorder %s20, 1
    %p211 = por %p209, %p210
    %p212 = scmp.ne.s32.totalorder %s203, %s204
    %p213 = scmp.eq.s32.totalorder %s20, 0
    %p214 = por %p212, %p213
    %p215 = scmp.ne.s32.totalorder %s203, %s204
    %p216 = scmp.eq.s32.totalorder %s21, 1
    %p217 = por %p215, %p216
    %p219 = scmp.ne.s32.totalorder %s204, %s218
    %p220 = scmp.eq.s32.totalorder %s21, 0
    %p221 = por %p219, %p220
    %s222 = ssub.s32 %s15, %s22
    %p223 = scmp.eq.s32.totalorder %s222, 0
    %s225 = sadd.s32 %s224, 1
    %s226 = scalar_select %p223, %s224, %s225
    %p229 = pneg %p223
    %p230 = scmp.eq.s32.totalorder %s15, 1
    %p231 = por %p229, %p230
    %p232 = scmp.ne.s32.totalorder %s224, %s227
    %p233 = scmp.eq.s32.totalorder %s15, 0
    %p234 = por %p232, %p233
    %p235 = scmp.ne.s32.totalorder %s224, %s227
    %p236 = scmp.eq.s32.totalorder %s20, 1
    %p237 = por %p235, %p236
    %p238 = scmp.ne.s32.totalorder %s227, %s228
    %p239 = scmp.eq.s32.totalorder %s20, 0
    %p240 = por %p238, %p239
    %p241 = scmp.ne.s32.totalorder %s227, %s228
    %p242 = scmp.eq.s32.totalorder %s21, 1
    %p243 = por %p241, %p242
    %p245 = scmp.ne.s32.totalorder %s228, %s244
    %p246 = scmp.eq.s32.totalorder %s21, 0
    %p247 = por %p245, %p246
    %p248 = scmp.le.s32.totalorder 1, %s15
    %p249 = scmp.lt.s32.totalorder %s15, 3
    %p250 = pnand %p248, %p249
    %p251 = pneg %p250
    // Predicated region
    $region9: #{up1_forward.1} parent=5 // pred_check
      _
    $region10: #{up1_forward.1} parent=5 // pred_check_branch
      %253 = sbr.rel (%p250) target = $region12
    $region11: #{up1_forward.1} parent=5 // pred_region
      %s254 = ssub.s32 %s15, 1
      // Predicated region
      $region13: #{up1_forward.1} parent=11 // pred_check
        %p255 = pneg %p88
      $region14: #{up1_forward.1} parent=11 // pred_check_branch
        %257 = sbr.rel (%p255) target = $region16
      $region15: #{up1_forward.1} parent=11 // pred_region
        _
      $region16: #{up1_forward.1} parent=11 // pred_fallthru
        _
      // Predicated region
      $region17: #{up1_forward.1} parent=11 // pred_check
        %p258 = pneg %p109
      $region18: #{up1_forward.1} parent=11 // pred_check_branch
        %260 = sbr.rel (%p258) target = $region20
      $region19: #{up1_forward.1} parent=11 // pred_region
        _
      $region20: #{up1_forward.1} parent=11 // pred_fallthru
        _
      // Predicated region
      $region21: #{up1_forward.1} parent=11 // pred_check
        %p261 = pneg %p130
      $region22: #{up1_forward.1} parent=11 // pred_check_branch
        %263 = sbr.rel (%p261) target = $region24
      $region23: #{up1_forward.1} parent=11 // pred_region
        _
      $region24: #{up1_forward.1} parent=11 // pred_fallthru
        _
      // Predicated region
      $region25: #{up1_forward.1} parent=11 // pred_check
        %p264 = pneg %p151
      $region26: #{up1_forward.1} parent=11 // pred_check_branch
        %266 = sbr.rel (%p264) target = $region28
      $region27: #{up1_forward.1} parent=11 // pred_region
        _
      $region28: #{up1_forward.1} parent=11 // pred_fallthru
        _
      // Predicated region
      $region29: #{up1_forward.1} parent=11 // pred_check
        %p267 = pneg %p172
      $region30: #{up1_forward.1} parent=11 // pred_check_branch
        %269 = sbr.rel (%p267) target = $region32
      $region31: #{up1_forward.1} parent=11 // pred_region
        _
      $region32: #{up1_forward.1} parent=11 // pred_fallthru
        _
      // Predicated region
      $region33: #{up1_forward.1} parent=11 // pred_check
        %p270 = pneg %p193
      $region34: #{up1_forward.1} parent=11 // pred_check_branch
        %272 = sbr.rel (%p270) target = $region36
      $region35: #{up1_forward.1} parent=11 // pred_region
        _
      $region36: #{up1_forward.1} parent=11 // pred_fallthru
        _
      // Predicated region
      $region37: #{up1_forward.1} parent=11 // pred_check
        %p273 = pneg %p214
      $region38: #{up1_forward.1} parent=11 // pred_check_branch
        %275 = sbr.rel (%p273) target = $region40
      $region39: #{up1_forward.1} parent=11 // pred_region
        _
      $region40: #{up1_forward.1} parent=11 // pred_fallthru
        _
    $region12: #{up1_forward.1} parent=5 // pred_fallthru
      _
    %p276 = scmp.lt.s32.totalorder %s15, 2
    // Predicated region
    $region41: #{up1_forward.1} parent=5 // pred_check
      %p277 = pneg %p276
    $region42: #{up1_forward.1} parent=5 // pred_check_branch
      %279 = sbr.rel (%p277) target = $region44
    $region43: #{up1_forward.1} parent=5 // pred_region
      // Predicated region
      $region45: #{up1_forward.1} parent=43 // pred_check
        %p280 = pneg %p35
      $region46: #{up1_forward.1} parent=43 // pred_check_branch
        %282 = sbr.rel (%p280) target = $region48
      $region47: #{up1_forward.1} parent=43 // pred_region
        %p283 = scmp.lt.s32.totalorder %s15, 1
        %s284 = scalar_select %p283, %s15, 1
        %s285 = smul.addr %s284, 2
        %s286 = smul.addr %s285, 8
        %s287 = scalar_lea.vmem %s0, %s286
      $region48: #{up1_forward.1} parent=43 // pred_fallthru
        _
      // Predicated region
      $region49: #{up1_forward.1} parent=43 // pred_check
        %p288 = pneg %p61
      $region50: #{up1_forward.1} parent=43 // pred_check_branch
        %290 = sbr.rel (%p288) target = $region52
      $region51: #{up1_forward.1} parent=43 // pred_region
        %p291 = scmp.lt.s32.totalorder %s15, 1
        %s292 = scalar_select %p291, %s15, 1
        %s293 = smul.addr %s292, 2
        %s294 = smul.addr %s293, 4
        %s295 = scalar_lea.vmem %s1, %s294
      $region52: #{up1_forward.1} parent=43 // pred_fallthru
        _
    $region44: #{up1_forward.1} parent=5 // pred_fallthru
      _
    %p296 = scmp.le.s32.totalorder 1, %s15
    %p297 = scmp.lt.s32.totalorder %s15, 3
    %p298 = pnand %p296, %p297
    %p299 = pneg %p298
    // Predicated region
    $region53: #{up1_forward.1} parent=5 // pred_check
      _
    $region54: #{up1_forward.1} parent=5 // pred_check_branch
      %301 = sbr.rel (%p298) target = $region56
    $region55: #{up1_forward.1} parent=5 // pred_region
      %s302 = ssub.s32 %s15, 1
      %p303 = scmp.lt.s32.totalorder %s20, 1
      %s304 = scalar_select %p303, %s20, 1
      %s305 = smul.addr %s304, 2
      %s306 = smul.addr %s305, 8
      %s307 = scalar_lea.vmem %s0, %s306
      %p308 = pneg %p41
      %p309 = pneg %p38
      %p310 = scmp.lt.s32.totalorder %s20, 1
      %s311 = scalar_select %p310, %s20, 1
      %s312 = smul.addr %s311, 2
      %s313 = smul.addr %s312, 4
      %s314 = scalar_lea.vmem %s1, %s313
      %p315 = pneg %p67
      %p316 = pneg %p64
      %p317 = pneg %p88
      %p318 = pneg %p85
      %p319 = pneg %p109
      %p320 = pneg %p106
      %p321 = pneg %p130
      %p322 = pneg %p127
      %p323 = pneg %p151
      %p324 = pneg %p148
      %p325 = pneg %p172
      %p326 = pneg %p169
      %p327 = pneg %p193
      %p328 = pneg %p190
      %p329 = pneg %p214
      %p330 = pneg %p211
      %p331 = pneg %p240
      %p332 = pneg %p237
      %p333 = scmp.lt.s32.totalorder %s20, 1
      %s334 = scalar_select %p333, %s20, 1
      %s335 = smul.addr %s334, 2
      %s336 = smul.addr %s335, 4
      %s337 = scalar_lea.vmem %s9, %s336
      %p338 = scmp.lt.s32.totalorder %s20, 1
      %s339 = scalar_select %p338, %s20, 1
      %s340 = smul.addr %s339, 2
      %s341 = smul.addr %s340, 8
      %s342 = scalar_lea.vmem %s0, %s341
      %p343 = scmp.lt.s32.totalorder %s20, 1
      %s344 = scalar_select %p343, %s20, 1
      %s345 = smul.addr %s344, 2
      %s346 = smul.addr %s345, 4
      %s347 = scalar_lea.vmem %s1, %s346
      %p348 = scmp.lt.s32.totalorder %s20, 1
      %s349 = scalar_select %p348, %s20, 1
      %s350 = smul.addr %s349, 2
      %s351 = smul.addr %s350, 4
      %s352 = scalar_lea.vmem %s9, %s351
      %v353 = vld [vmem:[%s3] sm:$0xff]
      %v354 = vld [vmem:[%s3 + $0x8] sm:$0xff]
      %v355 = vld [vmem:[%s342] sm:$0xff]
      %v356 = vld [vmem:[%s342 + $0x8] sm:$0xff]
      %vm357 = vcmask 64512
      %v359 = vsel %vm357, %v353, 0
      %v362 = vsel %vm357, %v354, 0
      %364 = vmatprep.subr.mxu0 0.0
      %365 = vmatpush1.msra.mxu0 0.0
      %366 = vmatprep.subr.mxu0 0.0
      %367 = vmatpush1.msra.mxu0 0.0
      %368 = vmatprep.subr.mxu0 0.0
      %369 = vmatpush1.msra.mxu0 0.0
      %370 = vmatprep.subr.mxu0 0.0
      %371 = vmatpush1.msra.mxu0 0.0
      %372 = vmatprep.subr.mxu0 0.0
      %373 = vmatpush1.msra.mxu0 0.0
      %374 = vmatprep.subr.mxu0 0.0
      %375 = vmatpush1.msra.mxu0 0.0
      %376 = vmatprep.subr.mxu0 0.0
      %377 = vmatpush1.msra.mxu0 0.0
      %378 = vmatprep.subr.mxu0 0.0
      %379 = vmatpush1.msra.mxu0 0.0
      %380 = vmatprep.subr.mxu0 0.0
      %381 = vmatpush1.msra.mxu0 0.0
      %382 = vmatprep.subr.mxu0 0.0
      %383 = vmatpush1.msra.mxu0 0.0
      %384 = vmatprep.subr.mxu0 0.0
      %385 = vmatpush1.msra.mxu0 0.0
      %386 = vmatprep.subr.mxu0 0.0
      %387 = vmatpush1.msra.mxu0 0.0
      %388 = vmatprep.subr.mxu0 0.0
      %389 = vmatpush1.msra.mxu0 0.0
      %390 = vmatprep.subr.mxu0 0.0
      %391 = vmatpush1.msra.mxu0 0.0
      %392 = vmatprep.subr.mxu0 0.0
      %393 = vmatpush1.msra.mxu0 0.0
      %394 = vmatprep.subr.mxu0 %v356
      %395 = vmatpush1.msra.mxu0 %v355
      %396 = vmatprep.subr.mxu0 0.0
      %397 = vmatpush2.msra.mxu0 0.0
      %398 = vmatprep.subr.mxu0 0.0
      %399 = vmatpush2.msra.mxu0 0.0
      %400 = vmatprep.subr.mxu0 0.0
      %401 = vmatpush2.msra.mxu0 0.0
      %402 = vmatprep.subr.mxu0 0.0
      %403 = vmatpush2.msra.mxu0 0.0
      %404 = vmatprep.subr.mxu0 0.0
      %405 = vmatpush2.msra.mxu0 0.0
      %406 = vmatprep.subr.mxu0 0.0
      %407 = vmatpush2.msra.mxu0 0.0
      %408 = vmatprep.subr.mxu0 0.0
      %409 = vmatpush2.msra.mxu0 0.0
      %410 = vmatprep.subr.mxu0 0.0
      %411 = vmatpush2.msra.mxu0 0.0
      %412 = vmatprep.subr.mxu0 0.0
      %413 = vmatpush2.msra.mxu0 0.0
      %414 = vmatprep.subr.mxu0 0.0
      %415 = vmatpush2.msra.mxu0 0.0
      %416 = vmatprep.subr.mxu0 0.0
      %417 = vmatpush2.msra.mxu0 0.0
      %418 = vmatprep.subr.mxu0 0.0
      %419 = vmatpush2.msra.mxu0 0.0
      %420 = vmatprep.subr.mxu0 0.0
      %421 = vmatpush2.msra.mxu0 0.0
      %422 = vmatprep.subr.mxu0 0.0
      %423 = vmatpush2.msra.mxu0 0.0
      %424 = vmatprep.subr.mxu0 0.0
      %425 = vmatpush2.msra.mxu0 0.0
      %426 = vmatprep.subr.mxu0 0.0
      %427 = vmatpush2.msra.mxu0 0.0
      %428 = vmatprep.mubr.f32.mxu0 0.0
      %429 = vmatmul.mubr.f32.gmra.mxu0 %v359
      %v430 = vpop.f32.mrf.mxu0
      %v431 = vadd.f32 0.0, %v430
      %v432 = vpop.f32.mrf.mxu0
      %v433 = vadd.f32 0.0, %v432
      %434 = vmatprep.mubr.f32.mxu0 0.0
      %435 = vmatmul.mubr.f32.gmra.mxu0 %v362
      %v436 = vpop.f32.mrf.mxu0
      %v437 = vadd.f32 0.0, %v436
      %v438 = vpop.f32.mrf.mxu0
      %v439 = vadd.f32 0.0, %v438
      %440 = vdwg.mxu0
      %v441 = vld [vmem:[%s2] sm:$0xff]
      %v443 = vlaneseq
      %v444 = vshrl.u32 %v443, 7
      %v445 = vsub.s32 0, %v444
      %v446 = vrot.slane %v441, %v445
      %v447 = vlaneseq
      %v448 = vshrl.u32 %v447, 7
      %v449 = vsub.s32 4, %v448
      %v450 = vrot.slane %v441, %v449
      %v453 = vlaneseq
      %v454 = vshrl.u32 %v453, 7
      %v455 = vsub.s32 0, %v454
      %v456 = vrot.slane %v446, %v455
      %v457 = vlaneseq
      %v458 = vshrl.u32 %v457, 7
      %v459 = vsub.s32 0, %v458
      %v460 = vrot.slane %v450, %v459
      %v461 = vmul.f32 %v431, %v456
      %v462 = vmul.f32 %v433, %v460
      %v463 = vlaneseq
      %v464 = vshrl.u32 %v463, 7
      %v465 = vsub.s32 1, %v464
      %v466 = vrot.slane %v441, %v465
      %v467 = vlaneseq
      %v468 = vshrl.u32 %v467, 7
      %v469 = vsub.s32 5, %v468
      %v470 = vrot.slane %v441, %v469
      %v473 = vlaneseq
      %v474 = vshrl.u32 %v473, 7
      %v475 = vsub.s32 1, %v474
      %v476 = vrot.slane %v466, %v475
      %v477 = vlaneseq
      %v478 = vshrl.u32 %v477, 7
      %v479 = vsub.s32 1, %v478
      %v480 = vrot.slane %v470, %v479
      %v481 = vmul.f32 %v431, %v476
      %v482 = vmul.f32 %v433, %v480
      %v485 = vrot.slane %v481, 4
      %v486 = vrot.slane %v482, 4
      %v489 = vadd.f32 %v461, %v485
      %v490 = vadd.f32 %v462, %v486
      %v491 = vlaneseq
      %v492 = vshrl.u32 %v491, 7
      %v493 = vsub.s32 2, %v492
      %v494 = vrot.slane %v441, %v493
      %v495 = vlaneseq
      %v496 = vshrl.u32 %v495, 7
      %v497 = vsub.s32 6, %v496
      %v498 = vrot.slane %v441, %v497
      %v501 = vlaneseq
      %v502 = vshrl.u32 %v501, 7
      %v503 = vsub.s32 2, %v502
      %v504 = vrot.slane %v494, %v503
      %v505 = vlaneseq
      %v506 = vshrl.u32 %v505, 7
      %v507 = vsub.s32 2, %v506
      %v508 = vrot.slane %v498, %v507
      %v509 = vmul.f32 %v437, %v504
      %v510 = vmul.f32 %v439, %v508
      %v511 = vadd.f32 %v489, %v509
      %v512 = vadd.f32 %v490, %v510
      %v513 = vlaneseq
      %v514 = vshrl.u32 %v513, 7
      %v515 = vsub.s32 3, %v514
      %v516 = vrot.slane %v441, %v515
      %v517 = vlaneseq
      %v518 = vshrl.u32 %v517, 7
      %v519 = vsub.s32 7, %v518
      %v520 = vrot.slane %v441, %v519
      %v523 = vlaneseq
      %v524 = vshrl.u32 %v523, 7
      %v525 = vsub.s32 3, %v524
      %v526 = vrot.slane %v516, %v525
      %v527 = vlaneseq
      %v528 = vshrl.u32 %v527, 7
      %v529 = vsub.s32 3, %v528
      %v530 = vrot.slane %v520, %v529
      %v531 = vmul.f32 %v437, %v526
      %v532 = vmul.f32 %v439, %v530
      %v535 = vrot.slane %v531, 4
      %v536 = vrot.slane %v532, 4
      %v539 = vadd.f32 %v511, %v535
      %v540 = vadd.f32 %v512, %v536
      %v541 = vld [vmem:[%s4] sm:$0xf]
      %543 = vset.pattern.permute.xlu0 0
      %544 = vperm.xlu0 %543, %v541
      %v545 = vpop.permute.xlu0 %544
      %v547 = vadd.f32 %v539, %v545
      %v548 = vadd.f32 %v540, %v545
      %v549 = vmax.f32 %v547, 0.0
      %v550 = vmax.f32 %v548, 0.0
      %v551 = vld [vmem:[%s347] sm:$0xff]
      %v553 = vcombine.low %v551, %v551
      %vm555 = vcmask 1043456
      %v556 = vsel %vm555, %v549, %v553
      %v557 = vsel %vm555, %v550, %v551
      %560 = vrot.lane.b32.xlu0 %v556, 127
      %v561 = vpop.permute.xlu0 %560
      %562 = vrot.lane.b32.xlu0 %v557, 127
      %v563 = vpop.permute.xlu0 %562
      %vm564 = vcmask 1039360
      %v565 = vsel %vm564, %v561, %v563
      %568 = vrot.lane.b32.xlu0 %v556, 126
      %v569 = vpop.permute.xlu0 %568
      %570 = vrot.lane.b32.xlu0 %v557, 126
      %v571 = vpop.permute.xlu0 %570
      %vm572 = vcmask 1031168
      %v573 = vsel %vm572, %v569, %v571
      %576 = vrot.lane.b32.xlu0 %v556, 114
      %v577 = vpop.permute.xlu0 %576
      %578 = vrot.lane.b32.xlu0 %v557, 114
      %v579 = vpop.permute.xlu0 %578
      %vm580 = vcmask 932864
      %v581 = vsel %vm580, %v577, %v579
      %584 = vrot.lane.b32.xlu0 %v556, 113
      %v585 = vpop.permute.xlu0 %584
      %586 = vrot.lane.b32.xlu0 %v557, 113
      %v587 = vpop.permute.xlu0 %586
      %vm588 = vcmask 924672
      %v589 = vsel %vm588, %v585, %v587
      %592 = vrot.lane.b32.xlu0 %v556, 112
      %v593 = vpop.permute.xlu0 %592
      %594 = vrot.lane.b32.xlu0 %v557, 112
      %v595 = vpop.permute.xlu0 %594
      %vm596 = vcmask 916480
      %v597 = vsel %vm596, %v593, %v595
      %600 = vrot.lane.b32.xlu0 %v556, 100
      %v601 = vpop.permute.xlu0 %600
      %602 = vrot.lane.b32.xlu0 %v557, 100
      %v603 = vpop.permute.xlu0 %602
      %vm604 = vcmask 818176
      %v605 = vsel %vm604, %v601, %v603
      %608 = vrot.lane.b32.xlu0 %v556, 99
      %v609 = vpop.permute.xlu0 %608
      %610 = vrot.lane.b32.xlu0 %v557, 99
      %v611 = vpop.permute.xlu0 %610
      %vm612 = vcmask 809984
      %v613 = vsel %vm612, %v609, %v611
      %616 = vrot.lane.b32.xlu0 %v556, 98
      %v617 = vpop.permute.xlu0 %616
      %618 = vrot.lane.b32.xlu0 %v557, 98
      %v619 = vpop.permute.xlu0 %618
      %vm620 = vcmask 801792
      %v621 = vsel %vm620, %v617, %v619
      %v624 = vld [vmem:[%s5] sm:$0xf]
      %v625 = vld [vmem:[%s6] sm:$0xf]
      %627 = vset.pattern.permute.xlu0 0
      %628 = vperm.xlu0 %627, %v625
      %v629 = vpop.permute.xlu0 %628
      %vm631 = vcmask 588800
      %v633 = vsel %vm631, %v624, 0
      %635 = vmatprep.subr.mxu0 0.0
      %636 = vmatpush1.msra.mxu0 0.0
      %637 = vmatprep.subr.mxu0 0.0
      %638 = vmatpush1.msra.mxu0 0.0
      %639 = vmatprep.subr.mxu0 0.0
      %640 = vmatpush1.msra.mxu0 0.0
      %641 = vmatprep.subr.mxu0 0.0
      %642 = vmatpush1.msra.mxu0 0.0
      %643 = vmatprep.subr.mxu0 0.0
      %644 = vmatpush1.msra.mxu0 0.0
      %645 = vmatprep.subr.mxu0 0.0
      %646 = vmatpush1.msra.mxu0 0.0
      %647 = vmatprep.subr.mxu0 0.0
      %648 = vmatpush1.msra.mxu0 0.0
      %649 = vmatprep.subr.mxu0 %v619
      %650 = vmatpush1.msra.mxu0 %v621
      %651 = vmatprep.subr.mxu0 %v611
      %652 = vmatpush1.msra.mxu0 %v613
      %653 = vmatprep.subr.mxu0 %v603
      %654 = vmatpush1.msra.mxu0 %v605
      %655 = vmatprep.subr.mxu0 %v595
      %656 = vmatpush1.msra.mxu0 %v597
      %657 = vmatprep.subr.mxu0 %v587
      %658 = vmatpush1.msra.mxu0 %v589
      %659 = vmatprep.subr.mxu0 %v579
      %660 = vmatpush1.msra.mxu0 %v581
      %661 = vmatprep.subr.mxu0 %v571
      %662 = vmatpush1.msra.mxu0 %v573
      %663 = vmatprep.subr.mxu0 %v563
      %664 = vmatpush1.msra.mxu0 %v565
      %665 = vmatprep.subr.mxu0 %v557
      %666 = vmatpush1.msra.mxu0 %v556
      %667 = vmatprep.subr.mxu0 0.0
      %668 = vmatpush2.msra.mxu0 0.0
      %669 = vmatprep.subr.mxu0 0.0
      %670 = vmatpush2.msra.mxu0 0.0
      %671 = vmatprep.subr.mxu0 0.0
      %672 = vmatpush2.msra.mxu0 0.0
      %673 = vmatprep.subr.mxu0 0.0
      %674 = vmatpush2.msra.mxu0 0.0
      %675 = vmatprep.subr.mxu0 0.0
      %676 = vmatpush2.msra.mxu0 0.0
      %677 = vmatprep.subr.mxu0 0.0
      %678 = vmatpush2.msra.mxu0 0.0
      %679 = vmatprep.subr.mxu0 0.0
      %680 = vmatpush2.msra.mxu0 0.0
      %681 = vmatprep.subr.mxu0 0.0
      %682 = vmatpush2.msra.mxu0 0.0
      %683 = vmatprep.subr.mxu0 0.0
      %684 = vmatpush2.msra.mxu0 0.0
      %685 = vmatprep.subr.mxu0 0.0
      %686 = vmatpush2.msra.mxu0 0.0
      %687 = vmatprep.subr.mxu0 0.0
      %688 = vmatpush2.msra.mxu0 0.0
      %689 = vmatprep.subr.mxu0 0.0
      %690 = vmatpush2.msra.mxu0 0.0
      %691 = vmatprep.subr.mxu0 0.0
      %692 = vmatpush2.msra.mxu0 0.0
      %693 = vmatprep.subr.mxu0 0.0
      %694 = vmatpush2.msra.mxu0 0.0
      %695 = vmatprep.subr.mxu0 0.0
      %696 = vmatpush2.msra.mxu0 0.0
      %697 = vmatprep.subr.mxu0 0.0
      %698 = vmatpush2.msra.mxu0 0.0
      %699 = vmatprep.mubr.f32.mxu0 0.0
      %700 = vmatmul.mubr.f32.gmra.mxu0 %v633
      %v701 = vpop.f32.mrf.mxu0
      %v702 = vadd.f32 %v629, %v701
      %v703 = vpop.f32.mrf.mxu0
      %v704 = vadd.f32 %v629, %v703
      %705 = vdwg.mxu0
      %v706 = vmax.f32 %v702, 0.0
      %v707 = vmax.f32 %v704, 0.0
      %v710 = vrot.slane %v706, 4
      %v711 = vrot.slane %v707, 4
      %712 = vrot.lane.b32.xlu0 %v710, 127
      %v713 = vpop.permute.xlu0 %712
      %714 = vrot.lane.b32.xlu0 %v711, 127
      %v715 = vpop.permute.xlu0 %714
      %v716 = vsel %vm564, %v713, %v715
      %719 = vrot.lane.b32.xlu0 %v706, 126
      %v720 = vpop.permute.xlu0 %719
      %721 = vrot.lane.b32.xlu0 %v707, 126
      %v722 = vpop.permute.xlu0 %721
      %v723 = vsel %vm572, %v720, %v722
      %726 = vrot.lane.b32.xlu0 %v710, 114
      %v727 = vpop.permute.xlu0 %726
      %728 = vrot.lane.b32.xlu0 %v711, 114
      %v729 = vpop.permute.xlu0 %728
      %v730 = vsel %vm580, %v727, %v729
      %733 = vrot.lane.b32.xlu0 %v706, 113
      %v734 = vpop.permute.xlu0 %733
      %735 = vrot.lane.b32.xlu0 %v707, 113
      %v736 = vpop.permute.xlu0 %735
      %v737 = vsel %vm588, %v734, %v736
      %740 = vrot.lane.b32.xlu0 %v710, 112
      %v741 = vpop.permute.xlu0 %740
      %742 = vrot.lane.b32.xlu0 %v711, 112
      %v743 = vpop.permute.xlu0 %742
      %v744 = vsel %vm596, %v741, %v743
      %747 = vrot.lane.b32.xlu0 %v706, 100
      %v748 = vpop.permute.xlu0 %747
      %749 = vrot.lane.b32.xlu0 %v707, 100
      %v750 = vpop.permute.xlu0 %749
      %v751 = vsel %vm604, %v748, %v750
      %754 = vrot.lane.b32.xlu0 %v710, 99
      %v755 = vpop.permute.xlu0 %754
      %756 = vrot.lane.b32.xlu0 %v711, 99
      %v757 = vpop.permute.xlu0 %756
      %v758 = vsel %vm612, %v755, %v757
      %761 = vrot.lane.b32.xlu0 %v706, 98
      %v762 = vpop.permute.xlu0 %761
      %763 = vrot.lane.b32.xlu0 %v707, 98
      %v764 = vpop.permute.xlu0 %763
      %v765 = vsel %vm620, %v762, %v764
      %v766 = vsel %vm555, %v706, %v716
      %v767 = vsel %vm555, %v707, %v715
      %v768 = vsel %vm555, %v723, %v730
      %v769 = vsel %vm555, %v722, %v729
      %v770 = vsel %vm555, %v737, %v744
      %v771 = vsel %vm555, %v736, %v743
      %v772 = vsel %vm555, %v751, %v758
      %v773 = vsel %vm555, %v750, %v757
      %v774 = vld [vmem:[%s7] sm:$0xf]
      %v775 = vld [vmem:[%s8] sm:$0xf]
      %777 = vset.pattern.permute.xlu0 0
      %778 = vperm.xlu0 %777, %v775
      %v779 = vpop.permute.xlu0 %778
      %vm781 = vcmask 293888
      %v783 = vsel %vm781, %v774, 0
      %v785 = vsel %vm555, %v765, 0
      %v787 = vsel %vm555, %v764, 0
      %789 = vmatprep.subr.mxu0 0.0
      %790 = vmatpush1.msra.mxu0 0.0
      %791 = vmatprep.subr.mxu0 0.0
      %792 = vmatpush1.msra.mxu0 0.0
      %793 = vmatprep.subr.mxu0 0.0
      %794 = vmatpush1.msra.mxu0 0.0
      %795 = vmatprep.subr.mxu0 0.0
      %796 = vmatpush1.msra.mxu0 0.0
      %797 = vmatprep.subr.mxu0 0.0
      %798 = vmatpush1.msra.mxu0 0.0
      %799 = vmatprep.subr.mxu0 0.0
      %800 = vmatpush1.msra.mxu0 0.0
      %801 = vmatprep.subr.mxu0 0.0
      %802 = vmatpush1.msra.mxu0 0.0
      %803 = vmatprep.subr.mxu0 0.0
      %804 = vmatpush1.msra.mxu0 0.0
      %805 = vmatprep.subr.mxu0 0.0
      %806 = vmatpush1.msra.mxu0 0.0
      %807 = vmatprep.subr.mxu0 0.0
      %808 = vmatpush1.msra.mxu0 0.0
      %809 = vmatprep.subr.mxu0 0.0
      %810 = vmatpush1.msra.mxu0 0.0
      %811 = vmatprep.subr.mxu0 %v787
      %812 = vmatpush1.msra.mxu0 %v785
      %813 = vmatprep.subr.mxu0 %v773
      %814 = vmatpush1.msra.mxu0 %v772
      %815 = vmatprep.subr.mxu0 %v771
      %816 = vmatpush1.msra.mxu0 %v770
      %817 = vmatprep.subr.mxu0 %v769
      %818 = vmatpush1.msra.mxu0 %v768
      %819 = vmatprep.subr.mxu0 %v767
      %820 = vmatpush1.msra.mxu0 %v766
      %821 = vmatprep.subr.mxu0 0.0
      %822 = vmatpush2.msra.mxu0 0.0
      %823 = vmatprep.subr.mxu0 0.0
      %824 = vmatpush2.msra.mxu0 0.0
      %825 = vmatprep.subr.mxu0 0.0
      %826 = vmatpush2.msra.mxu0 0.0
      %827 = vmatprep.subr.mxu0 0.0
      %828 = vmatpush2.msra.mxu0 0.0
      %829 = vmatprep.subr.mxu0 0.0
      %830 = vmatpush2.msra.mxu0 0.0
      %831 = vmatprep.subr.mxu0 0.0
      %832 = vmatpush2.msra.mxu0 0.0
      %833 = vmatprep.subr.mxu0 0.0
      %834 = vmatpush2.msra.mxu0 0.0
      %835 = vmatprep.subr.mxu0 0.0
      %836 = vmatpush2.msra.mxu0 0.0
      %837 = vmatprep.subr.mxu0 0.0
      %838 = vmatpush2.msra.mxu0 0.0
      %839 = vmatprep.subr.mxu0 0.0
      %840 = vmatpush2.msra.mxu0 0.0
      %841 = vmatprep.subr.mxu0 0.0
      %842 = vmatpush2.msra.mxu0 0.0
      %843 = vmatprep.subr.mxu0 0.0
      %844 = vmatpush2.msra.mxu0 0.0
      %845 = vmatprep.subr.mxu0 0.0
      %846 = vmatpush2.msra.mxu0 0.0
      %847 = vmatprep.subr.mxu0 0.0
      %848 = vmatpush2.msra.mxu0 0.0
      %849 = vmatprep.subr.mxu0 0.0
      %850 = vmatpush2.msra.mxu0 0.0
      %851 = vmatprep.subr.mxu0 0.0
      %852 = vmatpush2.msra.mxu0 0.0
      %853 = vmatprep.mubr.f32.mxu0 0.0
      %854 = vmatmul.mubr.f32.gmra.mxu0 %v783
      %v855 = vpop.f32.mrf.mxu0
      %v856 = vadd.f32 %v779, %v855
      %v857 = vpop.f32.mrf.mxu0
      %v858 = vadd.f32 %v779, %v857
      %859 = vdwg.mxu0
      %v860 = vmax.f32 %v856, 0.0
      %v861 = vmax.f32 %v858, 0.0
      %v864 = vcombine.low %v860, %v861
      %vm866 = vcmask 64516
      %vm867 = vmor %vm866, %vm555
      %868 = vst.msk [vmem:[%s352] sm:$0xff] %vm867, %v864
      %p869 = scmp.lt.s32.totalorder %s20, 1
      %s870 = scalar_select %p869, %s20, 1
      %s871 = smul.addr %s870, 2
      %s872 = smul.addr %s871, 4
      %s873 = scalar_lea.vmem %s9, %s872
      // Predicated region
      $region57: #{up1_forward.1} parent=55 // pred_check
        %p874 = pneg %p237
      $region58: #{up1_forward.1} parent=55 // pred_check_branch
        %876 = sbr.rel (%p874) target = $region60
      $region59: #{up1_forward.1} parent=55 // pred_region
        _
      $region60: #{up1_forward.1} parent=55 // pred_fallthru
        _
    $region56: #{up1_forward.1} parent=5 // pred_fallthru
      _
    %p877 = scmp.le.s32.totalorder 2, %s15
    // Predicated region
    $region61: #{up1_forward.1} parent=5 // pred_check
      %p878 = pneg %p877
    $region62: #{up1_forward.1} parent=5 // pred_check_branch
      %880 = sbr.rel (%p878) target = $region64
    $region63: #{up1_forward.1} parent=5 // pred_region
      %s881 = ssub.s32 %s15, 2
      // Predicated region
      $region65: #{up1_forward.1} parent=63 // pred_check
        %p882 = pneg %p243
      $region66: #{up1_forward.1} parent=63 // pred_check_branch
        %884 = sbr.rel (%p882) target = $region68
      $region67: #{up1_forward.1} parent=63 // pred_region
        %p885 = scmp.lt.s32.totalorder %s21, 1
        %s886 = scalar_select %p885, %s21, 1
        %s887 = smul.addr %s886, 2
        %s888 = smul.addr %s887, 4
        %s889 = scalar_lea.vmem %s9, %s888
      $region68: #{up1_forward.1} parent=63 // pred_fallthru
        _
    $region64: #{up1_forward.1} parent=5 // pred_fallthru
      _
  $region6: #{up1_forward.1} parent=0 // loop_footer
    %s19 = sadd.s32 1, %s15
  $region7: #{up1_forward.1} parent=0 // loop_footer_branch
    %14 = sbr.rel target = $region3
  $region8: #{up1_forward.1} parent=0 // loop_exit
    _

</llo_original>
